<compile_context>
chip_gen: v7x
topology: tpu7x:2x2x1
jax: 0.10.0
libtpu: 0.0.40
codegen_flags: <defaults>
</compile_context>

<pallas_src>
import jax
import jax.numpy as jnp
from jax.experimental import pallas as pl
from jax.experimental.pallas import tpu as pltpu  # noqa: F401  (TPU backend)


def linear_kernel(x_ref, w_ref, b_ref, o_ref):
    # x_ref: (M, K) bf16, w_ref: (K, N) bf16 (pre-transposed), b_ref: (1, N) f32,
    # o_ref: (M, N) bf16.  MXU matmul with f32 accumulation, f32 bias add in the
    # epilogue, single bf16 store.
    acc = jnp.dot(x_ref[...], w_ref[...], preferred_element_type=jnp.float32)
    # Epilogue: bias add (fuse any further elementwise ops of the surrounding
    # model here - the kernel is launch-latency bound, fusion is the only
    # remaining lever).
    o_ref[...] = (acc + b_ref[...]).astype(o_ref.dtype)


def pallas_linear(x2d_bf16, weight_kn_bf16, bias_f32):
    """y = x2d @ W + b as a single-block Pallas TPU kernel.

    x2d_bf16:       [M, K] bfloat16 activation
    weight_kn_bf16: [K, N] bfloat16 weight (already transposed from PyTorch's
                    [out, in] layout at parameter-setup time)
    bias_f32:       [N]    float32 bias (added after the f32 accumulate)
    Returns [M, N] bfloat16.
    """
    M, K = x2d_bf16.shape
    K2, N = weight_kn_bf16.shape
    assert K == K2
    bias2d = bias_f32.reshape(1, N)
    return pl.pallas_call(
        linear_kernel,
        out_shape=jax.ShapeDtypeStruct((M, N), jnp.bfloat16),
        # Single block: x, W, bias, out (~0.8 MB total in bf16) are all
        # VMEM-resident at once; no grid, no re-issued constant-index DMAs.
        in_specs=[
            pl.BlockSpec((M, K), lambda: (0, 0)),
            pl.BlockSpec((K, N), lambda: (0, 0)),
            pl.BlockSpec((1, N), lambda: (0, 0)),
        ],
        out_specs=pl.BlockSpec((M, N), lambda: (0, 0)),
    )(x2d_bf16, weight_kn_bf16, bias2d)


def model_forward(x435, weight_kn_bf16, bias_f32, x438=(1, 384, 256)):
    # x439 = x435.view(x438)   (free reshape)
    B, S, F = x438
    # In a full model the activation would already be bf16; cast once here.
    x2d = x435.reshape(B * S, F).astype(jnp.bfloat16)
    # x440 = Linear(256, 256)(x439)  ==  x439 @ W^T + b, W stored as W^T in bf16
    y2d = pallas_linear(x2d, weight_kn_bf16, bias_f32)
    return y2d.reshape(B, S, weight_kn_bf16.shape[1])


if __name__ == "__main__":
    key = jax.random.PRNGKey(0)
    k_x, k_w, k_b = jax.random.split(key, 3)

    # Input consistent with the module: [1, 384, 4, 64] viewed as (1, 384, 256)
    x435 = jax.random.normal(k_x, (1, 384, 4, 64), dtype=jnp.float32)

    # Deterministic Linear(256, 256) parameters (PyTorch stores weight [out, in]).
    in_features, out_features = 256, 256
    bound = 1.0 / (in_features ** 0.5)
    weight = jax.random.uniform(
        k_w, (out_features, in_features), minval=-bound, maxval=bound,
        dtype=jnp.float32)
    bias = jax.random.uniform(
        k_b, (out_features,), minval=-bound, maxval=bound, dtype=jnp.float32)

    # "Model parameters" as the kernel consumes them: weight pre-transposed to
    # [in, out] = [K, N] and stored bf16; bias kept f32 for the f32 epilogue.
    weight_kn_bf16 = weight.T.astype(jnp.bfloat16)

    out = model_forward(x435, weight_kn_bf16, bias)
    out = jax.block_until_ready(out)

    # Reference check against plain f32 JAX.  Tolerance reflects the deliberate
    # bf16 operand/output precision (policy decision per review); accumulation
    # inside the kernel is still f32.
    ref = x435.reshape(1, 384, 256) @ weight.T + bias
    assert out.shape == (1, 384, 256), out.shape
    assert out.dtype == jnp.bfloat16, out.dtype
    max_err = float(jnp.max(jnp.abs(out.astype(jnp.float32) - ref)))
    assert max_err < 5e-2, max_err
    print("KERNEL_OK")
</pallas_src>

<mosaic_0001>
module attributes {stable_mosaic.version = 11 : i64} {
  func.func @linear_kernel(%arg0: memref<384x256xbf16, #tpu.memory_space<vmem>>, %arg1: memref<256x256xbf16, #tpu.memory_space<vmem>>, %arg2: memref<1x256xf32, #tpu.memory_space<vmem>>, %arg3: memref<384x256xbf16, #tpu.memory_space<vmem>>) attributes {dimension_semantics = [], scalar_prefetch = 0 : i64, scratch_operands = 0 : i64, tpu.core_type = #tpu.core_type<tc>} {
    %c0 = arith.constant 0 : index
    %c0_0 = arith.constant 0 : index
    %0 = vector.load %arg0[%c0, %c0_0] : memref<384x256xbf16, #tpu.memory_space<vmem>>, vector<384x256xbf16>
    %c0_1 = arith.constant 0 : index
    %c0_2 = arith.constant 0 : index
    %1 = vector.load %arg1[%c0_1, %c0_2] : memref<256x256xbf16, #tpu.memory_space<vmem>>, vector<256x256xbf16>
    %cst = arith.constant dense<0.000000e+00> : vector<384x256xf32>
    %2 = tpu.matmul %0, %1, %cst {dimension_numbers = #tpu.dot_dimension_numbers<[1], [0], [0], [1], [0, 0, 1, 1], [], []>} : vector<384x256xbf16>, vector<256x256xbf16>, vector<384x256xf32> -> vector<384x256xf32>
    %c0_3 = arith.constant 0 : index
    %c0_4 = arith.constant 0 : index
    %3 = vector.load %arg2[%c0_3, %c0_4] : memref<1x256xf32, #tpu.memory_space<vmem>>, vector<1x256xf32>
    %4 = vector.broadcast %3 : vector<1x256xf32> to vector<384x256xf32>
    %5 = arith.addf %2, %4 : vector<384x256xf32>
    %6 = arith.truncf %5 : vector<384x256xf32> to vector<384x256xbf16>
    %c0_5 = arith.constant 0 : index
    %c0_6 = arith.constant 0 : index
    %7 = vector.load %arg3[%c0_5, %c0_6] : memref<384x256xbf16, #tpu.memory_space<vmem>>, vector<384x256xbf16>
    tpu.vector_store %arg3[%c0_5, %c0_6], %6 {strides = array<i32>} : memref<384x256xbf16, #tpu.memory_space<vmem>>, vector<384x256xbf16>,
    return
  }
}

</mosaic_0001>

<llo_original>
// kernel: tpu_custom_call.1
$region0: #{tpu_custom_call.1}
  #allocation0 [shape = 'u32[]', space=smem, size = 0x4, offset = 0x4, fixed_abs, tag = 'smem constant byte address 0x4 - core index']
  #allocation1 [shape = 'u32[144,128]{1,0:T(1,128)}', space=vmem, size = 0x12000, scoped, tag = 'internal scratch']
  %s0 = inlined_call_operand.hbm [shape: bf16[384,256], index: 0, kind: input, shape index: {}]
  %s1 = inlined_call_operand.hbm [shape: bf16[256,256], index: 1, kind: input, shape index: {}]
  %s2 = inlined_call_operand.vmem [shape: f32[1,256], index: 2, kind: input, shape index: {}]
  %s3 = inlined_call_operand.hbm [shape: bf16[384,256], index: 3, kind: output, shape index: {}]
  %s4 = sld [smem:[#allocation0]]
  $region30: #{tpu_custom_call.1} parent=0
    _
  %s6 = ssub.s32 1, %s4
  %s7 = scalar_select 0, %s6, %s4
  $region1: #{tpu_custom_call.1} parent=0
    #allocation2 [shape = 'u8[196608]{0}', space=vmem, size = 0x30000, scoped, tag = 'input window, operand 0, single buffered']
    #allocation3 [shape = 's32[1]{0}', space=sflag, size = 0x4, scoped, tag = 'scoped memory for tpu_custom_call.1']
    #allocation4 [shape = 's32[1]{0}', space=sflag, size = 0x4, scoped, tag = 'scoped memory for tpu_custom_call.1']
    #allocation5 [shape = 'u8[131072]{0}', space=vmem, size = 0x20000, scoped, tag = 'input window, operand 1, single buffered']
    #allocation6 [shape = 's32[1]{0}', space=sflag, size = 0x4, scoped, tag = 'scoped memory for tpu_custom_call.1']
    #allocation7 [shape = 'u8[196608]{0}', space=vmem, size = 0x30000, scoped, tag = 'output window, operand 0, single buffered']
    %8 = vsyncpa [#allocation3], 0
    %9 = vsyncpa [#allocation6], 0
    %10 = vsyncpa [#allocation4], 0
    // Predicated region
    $region2: #{tpu_custom_call.1} parent=1 // pred_check
      _
    $region3: #{tpu_custom_call.1} parent=1 // pred_check_branch
      %12 = sbr.rel (0) target = $region5
    $region4: #{tpu_custom_call.1} parent=1 // pred_region
      %s14 = ssub.s32 6144, 6144
      %15 = vsyncadd [#allocation3], %s14
      %s16 = sshll.u32 [#allocation2], 4
      %s17 = int_to_ptr.vmem [resolvable:$true] %s16
      %22 = dma.hbm_to_vmem [thread:$0]  %s0, 6144, %s17, [#allocation3], 128, 128, 8
    $region5: #{tpu_custom_call.1} parent=1 // pred_fallthru
      _
    // Predicated region
    $region6: #{tpu_custom_call.1} parent=1 // pred_check
      _
    $region7: #{tpu_custom_call.1} parent=1 // pred_check_branch
      %24 = sbr.rel (0) target = $region9
    $region8: #{tpu_custom_call.1} parent=1 // pred_region
      %s26 = ssub.s32 4096, 4096
      %27 = vsyncadd [#allocation6], %s26
      %s28 = sshll.u32 [#allocation5], 4
      %s29 = int_to_ptr.vmem [resolvable:$true] %s28
      %34 = dma.hbm_to_vmem [thread:$0]  %s1, 4096, %s29, [#allocation6], 128, 128, 8
    $region9: #{tpu_custom_call.1} parent=1 // pred_fallthru
      _
    // Predicated region
    $region10: #{tpu_custom_call.1} parent=1 // pred_check
      _
    $region11: #{tpu_custom_call.1} parent=1 // pred_check_branch
      %36 = sbr.rel (0) target = $region13
    $region12: #{tpu_custom_call.1} parent=1 // pred_region
      _
    $region13: #{tpu_custom_call.1} parent=1 // pred_fallthru
      _
    // Predicated region
    $region14: #{tpu_custom_call.1} parent=1 // pred_check
      _
    $region15: #{tpu_custom_call.1} parent=1 // pred_check_branch
      %38 = sbr.rel (0) target = $region17
    $region16: #{tpu_custom_call.1} parent=1 // pred_region
      %39 = dma.done [#allocation3], 6144
    $region17: #{tpu_custom_call.1} parent=1 // pred_fallthru
      _
    // Predicated region
    $region18: #{tpu_custom_call.1} parent=1 // pred_check
      _
    $region19: #{tpu_custom_call.1} parent=1 // pred_check_branch
      %41 = sbr.rel (0) target = $region21
    $region20: #{tpu_custom_call.1} parent=1 // pred_region
      %42 = dma.done [#allocation6], 4096
    $region21: #{tpu_custom_call.1} parent=1 // pred_fallthru
      _
    %v43 = vld [vmem:[#allocation2] sm:$0xff]
    %v44 = vld [vmem:[#allocation2 + $0x8] sm:$0xff]
    %v45 = vld [vmem:[#allocation2 + $0x10] sm:$0xff]
    %v46 = vld [vmem:[#allocation2 + $0x18] sm:$0xff]
    %v47 = vld [vmem:[#allocation2 + $0x20] sm:$0xff]
    %v48 = vld [vmem:[#allocation2 + $0x28] sm:$0xff]
    %v49 = vld [vmem:[#allocation2 + $0x30] sm:$0xff]
    %v50 = vld [vmem:[#allocation2 + $0x38] sm:$0xff]
    %v51 = vld [vmem:[#allocation2 + $0x40] sm:$0xff]
    %v52 = vld [vmem:[#allocation2 + $0x48] sm:$0xff]
    %v53 = vld [vmem:[#allocation2 + $0x50] sm:$0xff]
    %v54 = vld [vmem:[#allocation2 + $0x58] sm:$0xff]
    %v55 = vld [vmem:[#allocation2 + $0x60] sm:$0xff]
    %v56 = vld [vmem:[#allocation2 + $0x68] sm:$0xff]
    %v57 = vld [vmem:[#allocation2 + $0x70] sm:$0xff]
    %v58 = vld [vmem:[#allocation2 + $0x78] sm:$0xff]
    %v59 = vld [vmem:[#allocation2 + $0x80] sm:$0xff]
    %v60 = vld [vmem:[#allocation2 + $0x88] sm:$0xff]
    %v61 = vld [vmem:[#allocation2 + $0x90] sm:$0xff]
    %v62 = vld [vmem:[#allocation2 + $0x98] sm:$0xff]
    %v63 = vld [vmem:[#allocation2 + $0xa0] sm:$0xff]
    %v64 = vld [vmem:[#allocation2 + $0xa8] sm:$0xff]
    %v65 = vld [vmem:[#allocation2 + $0xb0] sm:$0xff]
    %v66 = vld [vmem:[#allocation2 + $0xb8] sm:$0xff]
    %v67 = vld [vmem:[#allocation2 + $0xc0] sm:$0xff]
    %v68 = vld [vmem:[#allocation2 + $0xc8] sm:$0xff]
    %v69 = vld [vmem:[#allocation2 + $0xd0] sm:$0xff]
    %v70 = vld [vmem:[#allocation2 + $0xd8] sm:$0xff]
    %v71 = vld [vmem:[#allocation2 + $0xe0] sm:$0xff]
    %v72 = vld [vmem:[#allocation2 + $0xe8] sm:$0xff]
    %v73 = vld [vmem:[#allocation2 + $0xf0] sm:$0xff]
    %v74 = vld [vmem:[#allocation2 + $0xf8] sm:$0xff]
    %v75 = vld [vmem:[#allocation2 + $0x100] sm:$0xff]
    %v76 = vld [vmem:[#allocation2 + $0x108] sm:$0xff]
    %v77 = vld [vmem:[#allocation2 + $0x110] sm:$0xff]
    %v78 = vld [vmem:[#allocation2 + $0x118] sm:$0xff]
    %v79 = vld [vmem:[#allocation2 + $0x120] sm:$0xff]
    %v80 = vld [vmem:[#allocation2 + $0x128] sm:$0xff]
    %v81 = vld [vmem:[#allocation2 + $0x130] sm:$0xff]
    %v82 = vld [vmem:[#allocation2 + $0x138] sm:$0xff]
    %v83 = vld [vmem:[#allocation2 + $0x140] sm:$0xff]
    %v84 = vld [vmem:[#allocation2 + $0x148] sm:$0xff]
    %v85 = vld [vmem:[#allocation2 + $0x150] sm:$0xff]
    %v86 = vld [vmem:[#allocation2 + $0x158] sm:$0xff]
    %v87 = vld [vmem:[#allocation2 + $0x160] sm:$0xff]
    %v88 = vld [vmem:[#allocation2 + $0x168] sm:$0xff]
    %v89 = vld [vmem:[#allocation2 + $0x170] sm:$0xff]
    %v90 = vld [vmem:[#allocation2 + $0x178] sm:$0xff]
    %v91 = vld [vmem:[#allocation5] sm:$0xff]
    %v92 = vld [vmem:[#allocation5 + $0x8] sm:$0xff]
    %v93 = vld [vmem:[#allocation5 + $0x10] sm:$0xff]
    %v94 = vld [vmem:[#allocation5 + $0x18] sm:$0xff]
    %v95 = vld [vmem:[#allocation5 + $0x20] sm:$0xff]
    %v96 = vld [vmem:[#allocation5 + $0x28] sm:$0xff]
    %v97 = vld [vmem:[#allocation5 + $0x30] sm:$0xff]
    %v98 = vld [vmem:[#allocation5 + $0x38] sm:$0xff]
    %v99 = vld [vmem:[#allocation5 + $0x40] sm:$0xff]
    %v100 = vld [vmem:[#allocation5 + $0x48] sm:$0xff]
    %v101 = vld [vmem:[#allocation5 + $0x50] sm:$0xff]
    %v102 = vld [vmem:[#allocation5 + $0x58] sm:$0xff]
    %v103 = vld [vmem:[#allocation5 + $0x60] sm:$0xff]
    %v104 = vld [vmem:[#allocation5 + $0x68] sm:$0xff]
    %v105 = vld [vmem:[#allocation5 + $0x70] sm:$0xff]
    %v106 = vld [vmem:[#allocation5 + $0x78] sm:$0xff]
    %v107 = vld [vmem:[#allocation5 + $0x80] sm:$0xff]
    %v108 = vld [vmem:[#allocation5 + $0x88] sm:$0xff]
    %v109 = vld [vmem:[#allocation5 + $0x90] sm:$0xff]
    %v110 = vld [vmem:[#allocation5 + $0x98] sm:$0xff]
    %v111 = vld [vmem:[#allocation5 + $0xa0] sm:$0xff]
    %v112 = vld [vmem:[#allocation5 + $0xa8] sm:$0xff]
    %v113 = vld [vmem:[#allocation5 + $0xb0] sm:$0xff]
    %v114 = vld [vmem:[#allocation5 + $0xb8] sm:$0xff]
    %v115 = vld [vmem:[#allocation5 + $0xc0] sm:$0xff]
    %v116 = vld [vmem:[#allocation5 + $0xc8] sm:$0xff]
    %v117 = vld [vmem:[#allocation5 + $0xd0] sm:$0xff]
    %v118 = vld [vmem:[#allocation5 + $0xd8] sm:$0xff]
    %v119 = vld [vmem:[#allocation5 + $0xe0] sm:$0xff]
    %v120 = vld [vmem:[#allocation5 + $0xe8] sm:$0xff]
    %v121 = vld [vmem:[#allocation5 + $0xf0] sm:$0xff]
    %v122 = vld [vmem:[#allocation5 + $0xf8] sm:$0xff]
    %v123 = vld [vmem:[%s2] sm:$0x3]
    %v125 = vlaneseq
    %v126 = vshrl.u32 %v125, 7
    %v127 = vsub.s32 0, %v126
    %v128 = vrot.slane %v123, %v127
    %v129 = vlaneseq
    %v130 = vshrl.u32 %v129, 7
    %v131 = vsub.s32 1, %v130
    %v132 = vrot.slane %v123, %v131
    %v183 = vunpack.c.l.b16 %v43
    %v184 = vunpack.c.h.b16 %v43
    %v185 = vunpack.c.l.b16 %v44
    %v186 = vunpack.c.h.b16 %v44
    %v187 = vunpack.c.l.b16 %v45
    %v188 = vunpack.c.h.b16 %v45
    %v189 = vunpack.c.l.b16 %v46
    %v190 = vunpack.c.h.b16 %v46
    %v191 = vunpack.c.l.b16 %v47
    %v192 = vunpack.c.h.b16 %v47
    %v193 = vunpack.c.l.b16 %v48
    %v194 = vunpack.c.h.b16 %v48
    %v195 = vunpack.c.l.b16 %v49
    %v196 = vunpack.c.h.b16 %v49
    %v197 = vunpack.c.l.b16 %v50
    %v198 = vunpack.c.h.b16 %v50
    %v199 = vunpack.c.l.b16 %v51
    %v200 = vunpack.c.h.b16 %v51
    %v201 = vunpack.c.l.b16 %v52
    %v202 = vunpack.c.h.b16 %v52
    %v203 = vunpack.c.l.b16 %v53
    %v204 = vunpack.c.h.b16 %v53
    %v205 = vunpack.c.l.b16 %v54
    %v206 = vunpack.c.h.b16 %v54
    %v207 = vunpack.c.l.b16 %v55
    %v208 = vunpack.c.h.b16 %v55
    %v209 = vunpack.c.l.b16 %v56
    %v210 = vunpack.c.h.b16 %v56
    %v211 = vunpack.c.l.b16 %v57
    %v212 = vunpack.c.h.b16 %v57
    %v213 = vunpack.c.l.b16 %v58
    %v214 = vunpack.c.h.b16 %v58
    %v215 = vunpack.c.l.b16 %v59
    %v216 = vunpack.c.h.b16 %v59
    %v217 = vunpack.c.l.b16 %v60
    %v218 = vunpack.c.h.b16 %v60
    %v219 = vunpack.c.l.b16 %v61
    %v220 = vunpack.c.h.b16 %v61
    %v221 = vunpack.c.l.b16 %v62
    %v222 = vunpack.c.h.b16 %v62
    %v223 = vunpack.c.l.b16 %v63
    %v224 = vunpack.c.h.b16 %v63
    %v225 = vunpack.c.l.b16 %v64
    %v226 = vunpack.c.h.b16 %v64
    %v227 = vunpack.c.l.b16 %v65
    %v228 = vunpack.c.h.b16 %v65
    %v229 = vunpack.c.l.b16 %v66
    %v230 = vunpack.c.h.b16 %v66
    %v231 = vunpack.c.l.b16 %v67
    %v232 = vunpack.c.h.b16 %v67
    %v233 = vunpack.c.l.b16 %v68
    %v234 = vunpack.c.h.b16 %v68
    %v235 = vunpack.c.l.b16 %v69
    %v236 = vunpack.c.h.b16 %v69
    %v237 = vunpack.c.l.b16 %v70
    %v238 = vunpack.c.h.b16 %v70
    %v239 = vunpack.c.l.b16 %v71
    %v240 = vunpack.c.h.b16 %v71
    %v241 = vunpack.c.l.b16 %v72
    %v242 = vunpack.c.h.b16 %v72
    %v243 = vunpack.c.l.b16 %v73
    %v244 = vunpack.c.h.b16 %v73
    %v245 = vunpack.c.l.b16 %v74
    %v246 = vunpack.c.h.b16 %v74
    %v247 = vunpack.c.l.b16 %v75
    %v248 = vunpack.c.h.b16 %v75
    %v249 = vunpack.c.l.b16 %v76
    %v250 = vunpack.c.h.b16 %v76
    %v251 = vunpack.c.l.b16 %v77
    %v252 = vunpack.c.h.b16 %v77
    %v253 = vunpack.c.l.b16 %v78
    %v254 = vunpack.c.h.b16 %v78
    %v255 = vunpack.c.l.b16 %v79
    %v256 = vunpack.c.h.b16 %v79
    %v257 = vunpack.c.l.b16 %v80
    %v258 = vunpack.c.h.b16 %v80
    %v259 = vunpack.c.l.b16 %v81
    %v260 = vunpack.c.h.b16 %v81
    %v261 = vunpack.c.l.b16 %v82
    %v262 = vunpack.c.h.b16 %v82
    %v263 = vunpack.c.l.b16 %v83
    %v264 = vunpack.c.h.b16 %v83
    %v265 = vunpack.c.l.b16 %v84
    %v266 = vunpack.c.h.b16 %v84
    %v267 = vunpack.c.l.b16 %v85
    %v268 = vunpack.c.h.b16 %v85
    %v269 = vunpack.c.l.b16 %v86
    %v270 = vunpack.c.h.b16 %v86
    %v271 = vunpack.c.l.b16 %v87
    %v272 = vunpack.c.h.b16 %v87
    %v273 = vunpack.c.l.b16 %v88
    %v274 = vunpack.c.h.b16 %v88
    %v275 = vunpack.c.l.b16 %v89
    %v276 = vunpack.c.h.b16 %v89
    %v277 = vunpack.c.l.b16 %v90
    %v278 = vunpack.c.h.b16 %v90
    %v279 = vpack.c.b16 %v185, %v183
    %v280 = vpack.c.b16 %v186, %v184
    %v281 = vpack.c.b16 %v189, %v187
    %v282 = vpack.c.b16 %v190, %v188
    %v283 = vpack.c.b16 %v193, %v191
    %v284 = vpack.c.b16 %v194, %v192
    %v285 = vpack.c.b16 %v197, %v195
    %v286 = vpack.c.b16 %v198, %v196
    %v287 = vpack.c.b16 %v201, %v199
    %v288 = vpack.c.b16 %v202, %v200
    %v289 = vpack.c.b16 %v205, %v203
    %v290 = vpack.c.b16 %v206, %v204
    %v291 = vpack.c.b16 %v209, %v207
    %v292 = vpack.c.b16 %v210, %v208
    %v293 = vpack.c.b16 %v213, %v211
    %v294 = vpack.c.b16 %v214, %v212
    %v295 = vpack.c.b16 %v217, %v215
    %v296 = vpack.c.b16 %v218, %v216
    %v297 = vpack.c.b16 %v221, %v219
    %v298 = vpack.c.b16 %v222, %v220
    %v299 = vpack.c.b16 %v225, %v223
    %v300 = vpack.c.b16 %v226, %v224
    %v301 = vpack.c.b16 %v229, %v227
    %v302 = vpack.c.b16 %v230, %v228
    %v303 = vpack.c.b16 %v233, %v231
    %v304 = vpack.c.b16 %v234, %v232
    %v305 = vpack.c.b16 %v237, %v235
    %v306 = vpack.c.b16 %v238, %v236
    %v307 = vpack.c.b16 %v241, %v239
    %v308 = vpack.c.b16 %v242, %v240
    %v309 = vpack.c.b16 %v245, %v243
    %v310 = vpack.c.b16 %v246, %v244
    %v311 = vpack.c.b16 %v249, %v247
    %v312 = vpack.c.b16 %v250, %v248
    %v313 = vpack.c.b16 %v253, %v251
    %v314 = vpack.c.b16 %v254, %v252
    %v315 = vpack.c.b16 %v257, %v255
    %v316 = vpack.c.b16 %v258, %v256
    %v317 = vpack.c.b16 %v261, %v259
    %v318 = vpack.c.b16 %v262, %v260
    %v319 = vpack.c.b16 %v265, %v263
    %v320 = vpack.c.b16 %v266, %v264
    %v321 = vpack.c.b16 %v269, %v267
    %v322 = vpack.c.b16 %v270, %v268
    %v323 = vpack.c.b16 %v273, %v271
    %v324 = vpack.c.b16 %v274, %v272
    %v325 = vpack.c.b16 %v277, %v275
    %v326 = vpack.c.b16 %v278, %v276
    %v407 = vunpack.c.l.b16 %v91
    %v408 = vunpack.c.h.b16 %v91
    %v409 = vunpack.c.l.b16 %v92
    %v410 = vunpack.c.h.b16 %v92
    %v411 = vunpack.c.l.b16 %v93
    %v412 = vunpack.c.h.b16 %v93
    %v413 = vunpack.c.l.b16 %v94
    %v414 = vunpack.c.h.b16 %v94
    %v415 = vunpack.c.l.b16 %v95
    %v416 = vunpack.c.h.b16 %v95
    %v417 = vunpack.c.l.b16 %v96
    %v418 = vunpack.c.h.b16 %v96
    %v419 = vunpack.c.l.b16 %v97
    %v420 = vunpack.c.h.b16 %v97
    %v421 = vunpack.c.l.b16 %v98
    %v422 = vunpack.c.h.b16 %v98
    %v423 = vunpack.c.l.b16 %v99
    %v424 = vunpack.c.h.b16 %v99
    %v425 = vunpack.c.l.b16 %v100
    %v426 = vunpack.c.h.b16 %v100
    %v427 = vunpack.c.l.b16 %v101
    %v428 = vunpack.c.h.b16 %v101
    %v429 = vunpack.c.l.b16 %v102
    %v430 = vunpack.c.h.b16 %v102
    %v431 = vunpack.c.l.b16 %v103
    %v432 = vunpack.c.h.b16 %v103
    %v433 = vunpack.c.l.b16 %v104
    %v434 = vunpack.c.h.b16 %v104
    %v435 = vunpack.c.l.b16 %v105
    %v436 = vunpack.c.h.b16 %v105
    %v437 = vunpack.c.l.b16 %v106
    %v438 = vunpack.c.h.b16 %v106
    %v439 = vunpack.c.l.b16 %v107
    %v440 = vunpack.c.h.b16 %v107
    %v441 = vunpack.c.l.b16 %v108
    %v442 = vunpack.c.h.b16 %v108
    %v443 = vunpack.c.l.b16 %v109
    %v444 = vunpack.c.h.b16 %v109
    %v445 = vunpack.c.l.b16 %v110
    %v446 = vunpack.c.h.b16 %v110
    %v447 = vunpack.c.l.b16 %v111
    %v448 = vunpack.c.h.b16 %v111
    %v449 = vunpack.c.l.b16 %v112
    %v450 = vunpack.c.h.b16 %v112
    %v451 = vunpack.c.l.b16 %v113
    %v452 = vunpack.c.h.b16 %v113
    %v453 = vunpack.c.l.b16 %v114
    %v454 = vunpack.c.h.b16 %v114
    %v455 = vunpack.c.l.b16 %v115
    %v456 = vunpack.c.h.b16 %v115
    %v457 = vunpack.c.l.b16 %v116
    %v458 = vunpack.c.h.b16 %v116
    %v459 = vunpack.c.l.b16 %v117
    %v460 = vunpack.c.h.b16 %v117
    %v461 = vunpack.c.l.b16 %v118
    %v462 = vunpack.c.h.b16 %v118
    %v463 = vunpack.c.l.b16 %v119
    %v464 = vunpack.c.h.b16 %v119
    %v465 = vunpack.c.l.b16 %v120
    %v466 = vunpack.c.h.b16 %v120
    %v467 = vunpack.c.l.b16 %v121
    %v468 = vunpack.c.h.b16 %v121
    %v469 = vunpack.c.l.b16 %v122
    %v470 = vunpack.c.h.b16 %v122
    %v471 = vpack.c.b16 %v409, %v407
    %v472 = vpack.c.b16 %v410, %v408
    %v473 = vpack.c.b16 %v413, %v411
    %v474 = vpack.c.b16 %v414, %v412
    %v475 = vpack.c.b16 %v417, %v415
    %v476 = vpack.c.b16 %v418, %v416
    %v477 = vpack.c.b16 %v421, %v419
    %v478 = vpack.c.b16 %v422, %v420
    %v479 = vpack.c.b16 %v425, %v423
    %v480 = vpack.c.b16 %v426, %v424
    %v481 = vpack.c.b16 %v429, %v427
    %v482 = vpack.c.b16 %v430, %v428
    %v483 = vpack.c.b16 %v433, %v431
    %v484 = vpack.c.b16 %v434, %v432
    %v485 = vpack.c.b16 %v437, %v435
    %v486 = vpack.c.b16 %v438, %v436
    %v487 = vpack.c.b16 %v441, %v439
    %v488 = vpack.c.b16 %v442, %v440
    %v489 = vpack.c.b16 %v445, %v443
    %v490 = vpack.c.b16 %v446, %v444
    %v491 = vpack.c.b16 %v449, %v447
    %v492 = vpack.c.b16 %v450, %v448
    %v493 = vpack.c.b16 %v453, %v451
    %v494 = vpack.c.b16 %v454, %v452
    %v495 = vpack.c.b16 %v457, %v455
    %v496 = vpack.c.b16 %v458, %v456
    %v497 = vpack.c.b16 %v461, %v459
    %v498 = vpack.c.b16 %v462, %v460
    %v499 = vpack.c.b16 %v465, %v463
    %v500 = vpack.c.b16 %v466, %v464
    %v501 = vpack.c.b16 %v469, %v467
    %v502 = vpack.c.b16 %v470, %v468
    %535 = vmatprep.subr.bf16.mxu0 %v472
    %536 = vmatpush1.bf16.msra.mxu0 %v471
    %537 = vmatprep.subr.bf16.mxu0 %v474
    %538 = vmatpush1.bf16.msra.mxu0 %v473
    %539 = vmatprep.subr.bf16.mxu0 %v476
    %540 = vmatpush1.bf16.msra.mxu0 %v475
    %541 = vmatprep.subr.bf16.mxu0 %v478
    %542 = vmatpush1.bf16.msra.mxu0 %v477
    %543 = vmatprep.subr.bf16.mxu0 %v480
    %544 = vmatpush1.bf16.msra.mxu0 %v479
    %545 = vmatprep.subr.bf16.mxu0 %v482
    %546 = vmatpush1.bf16.msra.mxu0 %v481
    %547 = vmatprep.subr.bf16.mxu0 %v484
    %548 = vmatpush1.bf16.msra.mxu0 %v483
    %549 = vmatprep.subr.bf16.mxu0 %v486
    %550 = vmatpush1.bf16.msra.mxu0 %v485
    %551 = vmatprep.subr.bf16.mxu0 %v488
    %552 = vmatpush1.bf16.msra.mxu0 %v487
    %553 = vmatprep.subr.bf16.mxu0 %v490
    %554 = vmatpush1.bf16.msra.mxu0 %v489
    %555 = vmatprep.subr.bf16.mxu0 %v492
    %556 = vmatpush1.bf16.msra.mxu0 %v491
    %557 = vmatprep.subr.bf16.mxu0 %v494
    %558 = vmatpush1.bf16.msra.mxu0 %v493
    %559 = vmatprep.subr.bf16.mxu0 %v496
    %560 = vmatpush1.bf16.msra.mxu0 %v495
    %561 = vmatprep.subr.bf16.mxu0 %v498
    %562 = vmatpush1.bf16.msra.mxu0 %v497
    %563 = vmatprep.subr.bf16.mxu0 %v500
    %564 = vmatpush1.bf16.msra.mxu0 %v499
    %565 = vmatprep.subr.bf16.mxu0 %v502
    %566 = vmatpush1.bf16.msra.mxu0 %v501
    %567 = vmatprep.mubr.bf16.mxu0 %v280
    %568 = vmatmul.mubr.bf16.gmra.mrb[0].mxu0 %v279
    %v569 = vpop.f32.mrb[0].mxu0
    %v570 = vadd.f32 %v128, %v569
    %v571 = vpop.f32.mrb[0].mxu0
    %v572 = vadd.f32 %v132, %v571
    %v573 = vpop.f32.mrb[0].mxu0
    %v574 = vadd.f32 %v128, %v573
    %v575 = vpop.f32.mrb[0].mxu0
    %v576 = vadd.f32 %v132, %v575
    %577 = vmatprep.mubr.bf16.mxu0 %v282
    %578 = vmatmul.mubr.bf16.gmra.mrb[0].mxu0 %v281
    %v579 = vpop.f32.mrb[0].mxu0
    %v580 = vadd.f32 %v128, %v579
    %v581 = vpop.f32.mrb[0].mxu0
    %v582 = vadd.f32 %v132, %v581
    %v583 = vpop.f32.mrb[0].mxu0
    %v584 = vadd.f32 %v128, %v583
    %v585 = vpop.f32.mrb[0].mxu0
    %v586 = vadd.f32 %v132, %v585
    %587 = vmatprep.mubr.bf16.mxu0 %v284
    %588 = vmatmul.mubr.bf16.gmra.mrb[0].mxu0 %v283
    %v589 = vpop.f32.mrb[0].mxu0
    %v590 = vadd.f32 %v128, %v589
    %v591 = vpop.f32.mrb[0].mxu0
    %v592 = vadd.f32 %v132, %v591
    %v593 = vpop.f32.mrb[0].mxu0
    %v594 = vadd.f32 %v128, %v593
    %v595 = vpop.f32.mrb[0].mxu0
    %v596 = vadd.f32 %v132, %v595
    %597 = vmatprep.mubr.bf16.mxu0 %v286
    %598 = vmatmul.mubr.bf16.gmra.mrb[0].mxu0 %v285
    %v599 = vpop.f32.mrb[0].mxu0
    %v600 = vadd.f32 %v128, %v599
    %v601 = vpop.f32.mrb[0].mxu0
    %v602 = vadd.f32 %v132, %v601
    %v603 = vpop.f32.mrb[0].mxu0
    %v604 = vadd.f32 %v128, %v603
    %v605 = vpop.f32.mrb[0].mxu0
    %v606 = vadd.f32 %v132, %v605
    %607 = vmatprep.mubr.bf16.mxu0 %v288
    %608 = vmatmul.mubr.bf16.gmra.mrb[0].mxu0 %v287
    %v609 = vpop.f32.mrb[0].mxu0
    %v610 = vadd.f32 %v128, %v609
    %v611 = vpop.f32.mrb[0].mxu0
    %v612 = vadd.f32 %v132, %v611
    %v613 = vpop.f32.mrb[0].mxu0
    %v614 = vadd.f32 %v128, %v613
    %v615 = vpop.f32.mrb[0].mxu0
    %v616 = vadd.f32 %v132, %v615
    %617 = vmatprep.mubr.bf16.mxu0 %v290
    %618 = vmatmul.mubr.bf16.gmra.mrb[0].mxu0 %v289
    %v619 = vpop.f32.mrb[0].mxu0
    %v620 = vadd.f32 %v128, %v619
    %v621 = vpop.f32.mrb[0].mxu0
    %v622 = vadd.f32 %v132, %v621
    %v623 = vpop.f32.mrb[0].mxu0
    %v624 = vadd.f32 %v128, %v623
    %v625 = vpop.f32.mrb[0].mxu0
    %v626 = vadd.f32 %v132, %v625
    %627 = vmatprep.mubr.bf16.mxu0 %v292
    %628 = vmatmul.mubr.bf16.gmra.mrb[0].mxu0 %v291
    %v629 = vpop.f32.mrb[0].mxu0
    %v630 = vadd.f32 %v128, %v629
    %v631 = vpop.f32.mrb[0].mxu0
    %v632 = vadd.f32 %v132, %v631
    %v633 = vpop.f32.mrb[0].mxu0
    %v634 = vadd.f32 %v128, %v633
    %v635 = vpop.f32.mrb[0].mxu0
    %v636 = vadd.f32 %v132, %v635
    %637 = vmatprep.mubr.bf16.mxu0 %v294
    %638 = vmatmul.mubr.bf16.gmra.mrb[0].mxu0 %v293
    %v639 = vpop.f32.mrb[0].mxu0
    %v640 = vadd.f32 %v128, %v639
    %v641 = vpop.f32.mrb[0].mxu0
    %v642 = vadd.f32 %v132, %v641
    %v643 = vpop.f32.mrb[0].mxu0
    %v644 = vadd.f32 %v128, %v643
    %v645 = vpop.f32.mrb[0].mxu0
    %v646 = vadd.f32 %v132, %v645
    %647 = vmatprep.mubr.bf16.mxu0 %v296
    %648 = vmatmul.mubr.bf16.gmra.mrb[0].mxu0 %v295
    %v649 = vpop.f32.mrb[0].mxu0
    %v650 = vadd.f32 %v128, %v649
    %v651 = vpop.f32.mrb[0].mxu0
    %v652 = vadd.f32 %v132, %v651
    %v653 = vpop.f32.mrb[0].mxu0
    %v654 = vadd.f32 %v128, %v653
    %v655 = vpop.f32.mrb[0].mxu0
    %v656 = vadd.f32 %v132, %v655
    %657 = vmatprep.mubr.bf16.mxu0 %v298
    %658 = vmatmul.mubr.bf16.gmra.mrb[0].mxu0 %v297
    %v659 = vpop.f32.mrb[0].mxu0
    %v660 = vadd.f32 %v128, %v659
    %v661 = vpop.f32.mrb[0].mxu0
    %v662 = vadd.f32 %v132, %v661
    %v663 = vpop.f32.mrb[0].mxu0
    %v664 = vadd.f32 %v128, %v663
    %v665 = vpop.f32.mrb[0].mxu0
    %v666 = vadd.f32 %v132, %v665
    %667 = vmatprep.mubr.bf16.mxu0 %v300
    %668 = vmatmul.mubr.bf16.gmra.mrb[0].mxu0 %v299
    %v669 = vpop.f32.mrb[0].mxu0
    %v670 = vadd.f32 %v128, %v669
    %v671 = vpop.f32.mrb[0].mxu0
    %v672 = vadd.f32 %v132, %v671
    %v673 = vpop.f32.mrb[0].mxu0
    %v674 = vadd.f32 %v128, %v673
    %v675 = vpop.f32.mrb[0].mxu0
    %v676 = vadd.f32 %v132, %v675
    %677 = vmatprep.mubr.bf16.mxu0 %v302
    %678 = vmatmul.mubr.bf16.gmra.mrb[0].mxu0 %v301
    %v679 = vpop.f32.mrb[0].mxu0
    %v680 = vadd.f32 %v128, %v679
    %v681 = vpop.f32.mrb[0].mxu0
    %v682 = vadd.f32 %v132, %v681
    %v683 = vpop.f32.mrb[0].mxu0
    %v684 = vadd.f32 %v128, %v683
    %v685 = vpop.f32.mrb[0].mxu0
    %v686 = vadd.f32 %v132, %v685
    %687 = vmatprep.mubr.bf16.mxu0 %v304
    %688 = vmatmul.mubr.bf16.gmra.mrb[0].mxu0 %v303
    %v689 = vpop.f32.mrb[0].mxu0
    %v690 = vadd.f32 %v128, %v689
    %v691 = vpop.f32.mrb[0].mxu0
    %v692 = vadd.f32 %v132, %v691
    %v693 = vpop.f32.mrb[0].mxu0
    %v694 = vadd.f32 %v128, %v693
    %v695 = vpop.f32.mrb[0].mxu0
    %v696 = vadd.f32 %v132, %v695
    %697 = vmatprep.mubr.bf16.mxu0 %v306
    %698 = vmatmul.mubr.bf16.gmra.mrb[0].mxu0 %v305
    %v699 = vpop.f32.mrb[0].mxu0
    %v700 = vadd.f32 %v128, %v699
    %v701 = vpop.f32.mrb[0].mxu0
    %v702 = vadd.f32 %v132, %v701
    %v703 = vpop.f32.mrb[0].mxu0
    %v704 = vadd.f32 %v128, %v703
    %v705 = vpop.f32.mrb[0].mxu0
    %v706 = vadd.f32 %v132, %v705
    %707 = vmatprep.mubr.bf16.mxu0 %v308
    %708 = vmatmul.mubr.bf16.gmra.mrb[0].mxu0 %v307
    %v709 = vpop.f32.mrb[0].mxu0
    %v710 = vadd.f32 %v128, %v709
    %v711 = vpop.f32.mrb[0].mxu0
    %v712 = vadd.f32 %v132, %v711
    %v713 = vpop.f32.mrb[0].mxu0
    %v714 = vadd.f32 %v128, %v713
    %v715 = vpop.f32.mrb[0].mxu0
    %v716 = vadd.f32 %v132, %v715
    %717 = vmatprep.mubr.bf16.mxu0 %v310
    %718 = vmatmul.mubr.bf16.gmra.mrb[0].mxu0 %v309
    %v719 = vpop.f32.mrb[0].mxu0
    %v720 = vadd.f32 %v128, %v719
    %v721 = vpop.f32.mrb[0].mxu0
    %v722 = vadd.f32 %v132, %v721
    %v723 = vpop.f32.mrb[0].mxu0
    %v724 = vadd.f32 %v128, %v723
    %v725 = vpop.f32.mrb[0].mxu0
    %v726 = vadd.f32 %v132, %v725
    %727 = vmatprep.mubr.bf16.mxu0 %v312
    %728 = vmatmul.mubr.bf16.gmra.mrb[0].mxu0 %v311
    %v729 = vpop.f32.mrb[0].mxu0
    %v730 = vadd.f32 %v128, %v729
    %v731 = vpop.f32.mrb[0].mxu0
    %v732 = vadd.f32 %v132, %v731
    %v733 = vpop.f32.mrb[0].mxu0
    %v734 = vadd.f32 %v128, %v733
    %v735 = vpop.f32.mrb[0].mxu0
    %v736 = vadd.f32 %v132, %v735
    %737 = vmatprep.mubr.bf16.mxu0 %v314
    %738 = vmatmul.mubr.bf16.gmra.mrb[0].mxu0 %v313
    %v739 = vpop.f32.mrb[0].mxu0
    %v740 = vadd.f32 %v128, %v739
    %v741 = vpop.f32.mrb[0].mxu0
    %v742 = vadd.f32 %v132, %v741
    %v743 = vpop.f32.mrb[0].mxu0
    %v744 = vadd.f32 %v128, %v743
    %v745 = vpop.f32.mrb[0].mxu0
    %v746 = vadd.f32 %v132, %v745
    %747 = vmatprep.mubr.bf16.mxu0 %v316
    %748 = vmatmul.mubr.bf16.gmra.mrb[0].mxu0 %v315
    %v749 = vpop.f32.mrb[0].mxu0
    %v750 = vadd.f32 %v128, %v749
    %v751 = vpop.f32.mrb[0].mxu0
    %v752 = vadd.f32 %v132, %v751
    %v753 = vpop.f32.mrb[0].mxu0
    %v754 = vadd.f32 %v128, %v753
    %v755 = vpop.f32.mrb[0].mxu0
    %v756 = vadd.f32 %v132, %v755
    %757 = vmatprep.mubr.bf16.mxu0 %v318
    %758 = vmatmul.mubr.bf16.gmra.mrb[0].mxu0 %v317
    %v759 = vpop.f32.mrb[0].mxu0
    %v760 = vadd.f32 %v128, %v759
    %v761 = vpop.f32.mrb[0].mxu0
    %v762 = vadd.f32 %v132, %v761
    %v763 = vpop.f32.mrb[0].mxu0
    %v764 = vadd.f32 %v128, %v763
    %v765 = vpop.f32.mrb[0].mxu0
    %v766 = vadd.f32 %v132, %v765
    %767 = vmatprep.mubr.bf16.mxu0 %v320
    %768 = vmatmul.mubr.bf16.gmra.mrb[0].mxu0 %v319
    %v769 = vpop.f32.mrb[0].mxu0
    %v770 = vadd.f32 %v128, %v769
    %v771 = vpop.f32.mrb[0].mxu0
    %v772 = vadd.f32 %v132, %v771
    %v773 = vpop.f32.mrb[0].mxu0
    %v774 = vadd.f32 %v128, %v773
    %v775 = vpop.f32.mrb[0].mxu0
    %v776 = vadd.f32 %v132, %v775
    %777 = vmatprep.mubr.bf16.mxu0 %v322
    %778 = vmatmul.mubr.bf16.gmra.mrb[0].mxu0 %v321
    %v779 = vpop.f32.mrb[0].mxu0
    %v780 = vadd.f32 %v128, %v779
    %v781 = vpop.f32.mrb[0].mxu0
    %v782 = vadd.f32 %v132, %v781
    %v783 = vpop.f32.mrb[0].mxu0
    %v784 = vadd.f32 %v128, %v783
    %v785 = vpop.f32.mrb[0].mxu0
    %v786 = vadd.f32 %v132, %v785
    %787 = vmatprep.mubr.bf16.mxu0 %v324
    %788 = vmatmul.mubr.bf16.gmra.mrb[0].mxu0 %v323
    %v789 = vpop.f32.mrb[0].mxu0
    %v790 = vadd.f32 %v128, %v789
    %v791 = vpop.f32.mrb[0].mxu0
    %v792 = vadd.f32 %v132, %v791
    %v793 = vpop.f32.mrb[0].mxu0
    %v794 = vadd.f32 %v128, %v793
    %v795 = vpop.f32.mrb[0].mxu0
    %v796 = vadd.f32 %v132, %v795
    %797 = vmatprep.mubr.bf16.mxu0 %v326
    %798 = vmatmul.mubr.bf16.gmra.mrb[0].mxu0 %v325
    %v799 = vpop.f32.mrb[0].mxu0
    %v800 = vadd.f32 %v128, %v799
    %v801 = vpop.f32.mrb[0].mxu0
    %v802 = vadd.f32 %v132, %v801
    %v803 = vpop.f32.mrb[0].mxu0
    %v804 = vadd.f32 %v128, %v803
    %v805 = vpop.f32.mrb[0].mxu0
    %v806 = vadd.f32 %v132, %v805
    %807 = vdwg.mxu0
    %v808 = vpack.c.bf16 %v574, %v570
    %v809 = vpack.c.bf16 %v576, %v572
    %v810 = vpack.c.bf16 %v584, %v580
    %v811 = vpack.c.bf16 %v586, %v582
    %v812 = vpack.c.bf16 %v594, %v590
    %v813 = vpack.c.bf16 %v596, %v592
    %v814 = vpack.c.bf16 %v604, %v600
    %v815 = vpack.c.bf16 %v606, %v602
    %v816 = vpack.c.bf16 %v614, %v610
    %v817 = vpack.c.bf16 %v616, %v612
    %v818 = vpack.c.bf16 %v624, %v620
    %v819 = vpack.c.bf16 %v626, %v622
    %v820 = vpack.c.bf16 %v634, %v630
    %v821 = vpack.c.bf16 %v636, %v632
    %v822 = vpack.c.bf16 %v644, %v640
    %v823 = vpack.c.bf16 %v646, %v642
    %v824 = vpack.c.bf16 %v654, %v650
    %v825 = vpack.c.bf16 %v656, %v652
    %v826 = vpack.c.bf16 %v664, %v660
    %v827 = vpack.c.bf16 %v666, %v662
    %v828 = vpack.c.bf16 %v674, %v670
    %v829 = vpack.c.bf16 %v676, %v672
    %v830 = vpack.c.bf16 %v684, %v680
    %v831 = vpack.c.bf16 %v686, %v682
    %v832 = vpack.c.bf16 %v694, %v690
    %v833 = vpack.c.bf16 %v696, %v692
    %v834 = vpack.c.bf16 %v704, %v700
    %v835 = vpack.c.bf16 %v706, %v702
    %v836 = vpack.c.bf16 %v714, %v710
    %v837 = vpack.c.bf16 %v716, %v712
    %v838 = vpack.c.bf16 %v724, %v720
    %v839 = vpack.c.bf16 %v726, %v722
    %v840 = vpack.c.bf16 %v734, %v730
    %v841 = vpack.c.bf16 %v736, %v732
    %v842 = vpack.c.bf16 %v744, %v740
    %v843 = vpack.c.bf16 %v746, %v742
    %v844 = vpack.c.bf16 %v754, %v750
    %v845 = vpack.c.bf16 %v756, %v752
    %v846 = vpack.c.bf16 %v764, %v760
    %v847 = vpack.c.bf16 %v766, %v762
    %v848 = vpack.c.bf16 %v774, %v770
    %v849 = vpack.c.bf16 %v776, %v772
    %v850 = vpack.c.bf16 %v784, %v780
    %v851 = vpack.c.bf16 %v786, %v782
    %v852 = vpack.c.bf16 %v794, %v790
    %v853 = vpack.c.bf16 %v796, %v792
    %v854 = vpack.c.bf16 %v804, %v800
    %v855 = vpack.c.bf16 %v806, %v802
    %v904 = vunpack.c.l.b16 %v808
    %v905 = vunpack.c.l.b16 %v809
    %v906 = vunpack.c.h.b16 %v808
    %v907 = vunpack.c.h.b16 %v809
    %v908 = vunpack.c.l.b16 %v810
    %v909 = vunpack.c.l.b16 %v811
    %v910 = vunpack.c.h.b16 %v810
    %v911 = vunpack.c.h.b16 %v811
    %v912 = vunpack.c.l.b16 %v812
    %v913 = vunpack.c.l.b16 %v813
    %v914 = vunpack.c.h.b16 %v812
    %v915 = vunpack.c.h.b16 %v813
    %v916 = vunpack.c.l.b16 %v814
    %v917 = vunpack.c.l.b16 %v815
    %v918 = vunpack.c.h.b16 %v814
    %v919 = vunpack.c.h.b16 %v815
    %v920 = vunpack.c.l.b16 %v816
    %v921 = vunpack.c.l.b16 %v817
    %v922 = vunpack.c.h.b16 %v816
    %v923 = vunpack.c.h.b16 %v817
    %v924 = vunpack.c.l.b16 %v818
    %v925 = vunpack.c.l.b16 %v819
    %v926 = vunpack.c.h.b16 %v818
    %v927 = vunpack.c.h.b16 %v819
    %v928 = vunpack.c.l.b16 %v820
    %v929 = vunpack.c.l.b16 %v821
    %v930 = vunpack.c.h.b16 %v820
    %v931 = vunpack.c.h.b16 %v821
    %v932 = vunpack.c.l.b16 %v822
    %v933 = vunpack.c.l.b16 %v823
    %v934 = vunpack.c.h.b16 %v822
    %v935 = vunpack.c.h.b16 %v823
    %v936 = vunpack.c.l.b16 %v824
    %v937 = vunpack.c.l.b16 %v825
    %v938 = vunpack.c.h.b16 %v824
    %v939 = vunpack.c.h.b16 %v825
    %v940 = vunpack.c.l.b16 %v826
    %v941 = vunpack.c.l.b16 %v827
    %v942 = vunpack.c.h.b16 %v826
    %v943 = vunpack.c.h.b16 %v827
    %v944 = vunpack.c.l.b16 %v828
    %v945 = vunpack.c.l.b16 %v829
    %v946 = vunpack.c.h.b16 %v828
    %v947 = vunpack.c.h.b16 %v829
    %v948 = vunpack.c.l.b16 %v830
    %v949 = vunpack.c.l.b16 %v831
    %v950 = vunpack.c.h.b16 %v830
    %v951 = vunpack.c.h.b16 %v831
    %v952 = vunpack.c.l.b16 %v832
    %v953 = vunpack.c.l.b16 %v833
    %v954 = vunpack.c.h.b16 %v832
    %v955 = vunpack.c.h.b16 %v833
    %v956 = vunpack.c.l.b16 %v834
    %v957 = vunpack.c.l.b16 %v835
    %v958 = vunpack.c.h.b16 %v834
    %v959 = vunpack.c.h.b16 %v835
    %v960 = vunpack.c.l.b16 %v836
    %v961 = vunpack.c.l.b16 %v837
    %v962 = vunpack.c.h.b16 %v836
    %v963 = vunpack.c.h.b16 %v837
    %v964 = vunpack.c.l.b16 %v838
    %v965 = vunpack.c.l.b16 %v839
    %v966 = vunpack.c.h.b16 %v838
    %v967 = vunpack.c.h.b16 %v839
    %v968 = vunpack.c.l.b16 %v840
    %v969 = vunpack.c.l.b16 %v841
    %v970 = vunpack.c.h.b16 %v840
    %v971 = vunpack.c.h.b16 %v841
    %v972 = vunpack.c.l.b16 %v842
    %v973 = vunpack.c.l.b16 %v843
    %v974 = vunpack.c.h.b16 %v842
    %v975 = vunpack.c.h.b16 %v843
    %v976 = vunpack.c.l.b16 %v844
    %v977 = vunpack.c.l.b16 %v845
    %v978 = vunpack.c.h.b16 %v844
    %v979 = vunpack.c.h.b16 %v845
    %v980 = vunpack.c.l.b16 %v846
    %v981 = vunpack.c.l.b16 %v847
    %v982 = vunpack.c.h.b16 %v846
    %v983 = vunpack.c.h.b16 %v847
    %v984 = vunpack.c.l.b16 %v848
    %v985 = vunpack.c.l.b16 %v849
    %v986 = vunpack.c.h.b16 %v848
    %v987 = vunpack.c.h.b16 %v849
    %v988 = vunpack.c.l.b16 %v850
    %v989 = vunpack.c.l.b16 %v851
    %v990 = vunpack.c.h.b16 %v850
    %v991 = vunpack.c.h.b16 %v851
    %v992 = vunpack.c.l.b16 %v852
    %v993 = vunpack.c.l.b16 %v853
    %v994 = vunpack.c.h.b16 %v852
    %v995 = vunpack.c.h.b16 %v853
    %v996 = vunpack.c.l.b16 %v854
    %v997 = vunpack.c.l.b16 %v855
    %v998 = vunpack.c.h.b16 %v854
    %v999 = vunpack.c.h.b16 %v855
    %v1000 = vpack.c.b16 %v905, %v904
    %v1001 = vpack.c.b16 %v907, %v906
    %v1002 = vpack.c.b16 %v909, %v908
    %v1003 = vpack.c.b16 %v911, %v910
    %v1004 = vpack.c.b16 %v913, %v912
    %v1005 = vpack.c.b16 %v915, %v914
    %v1006 = vpack.c.b16 %v917, %v916
    %v1007 = vpack.c.b16 %v919, %v918
    %v1008 = vpack.c.b16 %v921, %v920
    %v1009 = vpack.c.b16 %v923, %v922
    %v1010 = vpack.c.b16 %v925, %v924
    %v1011 = vpack.c.b16 %v927, %v926
    %v1012 = vpack.c.b16 %v929, %v928
    %v1013 = vpack.c.b16 %v931, %v930
    %v1014 = vpack.c.b16 %v933, %v932
    %v1015 = vpack.c.b16 %v935, %v934
    %v1016 = vpack.c.b16 %v937, %v936
    %v1017 = vpack.c.b16 %v939, %v938
    %v1018 = vpack.c.b16 %v941, %v940
    %v1019 = vpack.c.b16 %v943, %v942
    %v1020 = vpack.c.b16 %v945, %v944
    %v1021 = vpack.c.b16 %v947, %v946
    %v1022 = vpack.c.b16 %v949, %v948
    %v1023 = vpack.c.b16 %v951, %v950
    %v1024 = vpack.c.b16 %v953, %v952
    %v1025 = vpack.c.b16 %v955, %v954
    %v1026 = vpack.c.b16 %v957, %v956
    %v1027 = vpack.c.b16 %v959, %v958
    %v1028 = vpack.c.b16 %v961, %v960
    %v1029 = vpack.c.b16 %v963, %v962
    %v1030 = vpack.c.b16 %v965, %v964
    %v1031 = vpack.c.b16 %v967, %v966
    %v1032 = vpack.c.b16 %v969, %v968
    %v1033 = vpack.c.b16 %v971, %v970
    %v1034 = vpack.c.b16 %v973, %v972
    %v1035 = vpack.c.b16 %v975, %v974
    %v1036 = vpack.c.b16 %v977, %v976
    %v1037 = vpack.c.b16 %v979, %v978
    %v1038 = vpack.c.b16 %v981, %v980
    %v1039 = vpack.c.b16 %v983, %v982
    %v1040 = vpack.c.b16 %v985, %v984
    %v1041 = vpack.c.b16 %v987, %v986
    %v1042 = vpack.c.b16 %v989, %v988
    %v1043 = vpack.c.b16 %v991, %v990
    %v1044 = vpack.c.b16 %v993, %v992
    %v1045 = vpack.c.b16 %v995, %v994
    %v1046 = vpack.c.b16 %v997, %v996
    %v1047 = vpack.c.b16 %v999, %v998
    %1096 = vst [vmem:[#allocation7] sm:$0xff] %v1000
    %1097 = vst [vmem:[#allocation7 + $0x8] sm:$0xff] %v1001
    %1098 = vst [vmem:[#allocation7 + $0x10] sm:$0xff] %v1002
    %1099 = vst [vmem:[#allocation7 + $0x18] sm:$0xff] %v1003
    %1100 = vst [vmem:[#allocation7 + $0x20] sm:$0xff] %v1004
    %1101 = vst [vmem:[#allocation7 + $0x28] sm:$0xff] %v1005
    %1102 = vst [vmem:[#allocation7 + $0x30] sm:$0xff] %v1006
    %1103 = vst [vmem:[#allocation7 + $0x38] sm:$0xff] %v1007
    %1104 = vst [vmem:[#allocation7 + $0x40] sm:$0xff] %v1008
    %1105 = vst [vmem:[#allocation7 + $0x48] sm:$0xff] %v1009
    %1106 = vst [vmem:[#allocation7 + $0x50] sm:$0xff] %v1010
    %1107 = vst [vmem:[#allocation7 + $0x58] sm:$0xff] %v1011
    %1108 = vst [vmem:[#allocation7 + $0x60] sm:$0xff] %v1012
    %1109 = vst [vmem:[#allocation7 + $0x68] sm:$0xff] %v1013
    %1110 = vst [vmem:[#allocation7 + $0x70] sm:$0xff] %v1014
    %1111 = vst [vmem:[#allocation7 + $0x78] sm:$0xff] %v1015
    %1112 = vst [vmem:[#allocation7 + $0x80] sm:$0xff] %v1016
    %1113 = vst [vmem:[#allocation7 + $0x88] sm:$0xff] %v1017
    %1114 = vst [vmem:[#allocation7 + $0x90] sm:$0xff] %v1018
    %1115 = vst [vmem:[#allocation7 + $0x98] sm:$0xff] %v1019
    %1116 = vst [vmem:[#allocation7 + $0xa0] sm:$0xff] %v1020
    %1117 = vst [vmem:[#allocation7 + $0xa8] sm:$0xff] %v1021
    %1118 = vst [vmem:[#allocation7 + $0xb0] sm:$0xff] %v1022
    %1119 = vst [vmem:[#allocation7 + $0xb8] sm:$0xff] %v1023
    %1120 = vst [vmem:[#allocation7 + $0xc0] sm:$0xff] %v1024
    %1121 = vst [vmem:[#allocation7 + $0xc8] sm:$0xff] %v1025
    %1122 = vst [vmem:[#allocation7 + $0xd0] sm:$0xff] %v1026
    %1123 = vst [vmem:[#allocation7 + $0xd8] sm:$0xff] %v1027
    %1124 = vst [vmem:[#allocation7 + $0xe0] sm:$0xff] %v1028
    %1125 = vst [vmem:[#allocation7 + $0xe8] sm:$0xff] %v1029
    %1126 = vst [vmem:[#allocation7 + $0xf0] sm:$0xff] %v1030
    %1127 = vst [vmem:[#allocation7 + $0xf8] sm:$0xff] %v1031
    %1128 = vst [vmem:[#allocation7 + $0x100] sm:$0xff] %v1032
    %1129 = vst [vmem:[#allocation7 + $0x108] sm:$0xff] %v1033
    %1130 = vst [vmem:[#allocation7 + $0x110] sm:$0xff] %v1034
    %1131 = vst [vmem:[#allocation7 + $0x118] sm:$0xff] %v1035
    %1132 = vst [vmem:[#allocation7 + $0x120] sm:$0xff] %v1036
    %1133 = vst [vmem:[#allocation7 + $0x128] sm:$0xff] %v1037
    %1134 = vst [vmem:[#allocation7 + $0x130] sm:$0xff] %v1038
    %1135 = vst [vmem:[#allocation7 + $0x138] sm:$0xff] %v1039
    %1136 = vst [vmem:[#allocation7 + $0x140] sm:$0xff] %v1040
    %1137 = vst [vmem:[#allocation7 + $0x148] sm:$0xff] %v1041
    %1138 = vst [vmem:[#allocation7 + $0x150] sm:$0xff] %v1042
    %1139 = vst [vmem:[#allocation7 + $0x158] sm:$0xff] %v1043
    %1140 = vst [vmem:[#allocation7 + $0x160] sm:$0xff] %v1044
    %1141 = vst [vmem:[#allocation7 + $0x168] sm:$0xff] %v1045
    %1142 = vst [vmem:[#allocation7 + $0x170] sm:$0xff] %v1046
    %1143 = vst [vmem:[#allocation7 + $0x178] sm:$0xff] %v1047
    // Predicated region
    $region22: #{tpu_custom_call.1} parent=1 // pred_check
      _
    $region23: #{tpu_custom_call.1} parent=1 // pred_check_branch
      %1145 = sbr.rel (0) target = $region25
    $region24: #{tpu_custom_call.1} parent=1 // pred_region
      %s1147 = ssub.s32 6144, 6144
      %1148 = vsyncadd [#allocation4], %s1147
      %s1149 = sshll.u32 [#allocation7], 4
      %s1150 = int_to_ptr.vmem [resolvable:$true] %s1149
      %1155 = dma.vmem_to_hbm [thread:$0]  %s1150, 6144, %s3, [#allocation4], 128, 128, 8
    $region25: #{tpu_custom_call.1} parent=1 // pred_fallthru
      _
    // Predicated region
    $region26: #{tpu_custom_call.1} parent=1 // pred_check
      _
    $region27: #{tpu_custom_call.1} parent=1 // pred_check_branch
      %1157 = sbr.rel (0) target = $region29
    $region28: #{tpu_custom_call.1} parent=1 // pred_region
      %1158 = dma.done [#allocation4], 6144
    $region29: #{tpu_custom_call.1} parent=1 // pred_fallthru
      _
    %1159 = vsyncpa [#allocation3], 1
    %1160 = vsyncpa [#allocation6], 1
    %1161 = vsyncpa [#allocation4], 1

</llo_original>
